<compile_context>
chip_gen: v6e
topology: v6e:2x2x1
jax: 0.10.0
libtpu: 0.0.40
codegen_flags: <defaults>
</compile_context>

<pallas_src>
import functools

import jax
import jax.numpy as jnp
from jax.experimental import pallas as pl
from jax.experimental.pallas import tpu as pltpu

KERNEL = 3
STRIDE = 3                              # PyTorch MaxPool2d: stride defaults to kernel_size
_MIN_GRID_STEPS = 8                     # >= 4 grid steps per v7x TensorCore
_BLOCK_VMEM_BUDGET = 8 * 1024 * 1024    # per-step block budget (double buffers + scratch)


def _pool_out_size(size, k=KERNEL, s=STRIDE):
    """PyTorch pooling output size (padding=0, dilation=1, ceil_mode=True)."""
    out = -(-(size - k) // s) + 1          # ceil((size - k) / s) + 1
    if (out - 1) * s >= size:              # last window must start inside the input
        out -= 1
    return out


def _vmem_limit_bytes():
    """Generation-aware scoped-VMEM cap: ~half of physical, clamped to 48 MiB
    (v5e/v6e: 128 MiB -> 48 MiB; v7x: 64 MiB/core -> 32 MiB; unknown -> 32 MiB)."""
    try:
        cap = pltpu.get_tpu_info().vmem_capacity_bytes
    except Exception:
        cap = 64 * 1024 * 1024
    return int(min(max(cap // 2, 16 * 1024 * 1024), 48 * 1024 * 1024))


def _choose_ctile(nc, h, w, oh, ow, itemsize):
    """Channels per grid step: keep >= _MIN_GRID_STEPS steps when possible while
    the per-step VMEM (double-buffered in/out blocks + scratch) stays ~1-4 MiB."""
    per_ch = itemsize * (2 * h * w + 2 * oh * ow + oh * w)
    cap = max(1, _BLOCK_VMEM_BUDGET // per_ch)
    want = max(1, nc // _MIN_GRID_STEPS)
    return max(1, min(cap, want))


def _pool_kernel_strided(x_ref, o_ref, y_ref, *, h, w, oh, ow):
    """Fused 3x3 / stride-3 max pool on one (ctile, h, w) block.

    Each of the three kH taps is a dense (ctile, nh, w) plane fetched with a
    stride-3 row read; likewise for the kW taps along the lane dim.  ceil_mode
    is handled by the statically shorter tap planes (no fill value needed)."""
    # kH: input row 3*i + kh contributes to scratch row i.
    y_ref[...] = x_ref[:, pl.ds(0, oh, STRIDE), :]
    for kh in (1, 2):
        nh = (h - kh + STRIDE - 1) // STRIDE          # valid output rows for this tap
        if nh > 0:
            tap = x_ref[:, pl.ds(kh, nh, STRIDE), :]  # (ctile, nh, w) dense plane
            y_ref[:, :nh, :] = jnp.maximum(y_ref[:, :nh, :], tap)
    # kW: column 3*j + kw contributes to output column j.
    o_ref[...] = y_ref[:, :, pl.ds(0, ow, STRIDE)]
    for kw in (1, 2):
        nw = (w - kw + STRIDE - 1) // STRIDE
        if nw > 0:
            tap = y_ref[:, :, pl.ds(kw, nw, STRIDE)]  # (ctile, oh, nw) dense plane
            o_ref[:, :, :nw] = jnp.maximum(o_ref[:, :, :nw], tap)


def _pool_kernel_unrolled(x_ref, o_ref, y_ref, *, h, w, oh, ow):
    """Fallback without strided loads: per-output-row / per-output-column
    explicit maxima using only unit-stride slices (always lowers)."""
    for i in range(oh):
        r0, r1 = STRIDE * i, min(STRIDE * i + KERNEL, h)
        acc = x_ref[:, r0:r0 + 1, :]
        for r in range(r0 + 1, r1):
            acc = jnp.maximum(acc, x_ref[:, r:r + 1, :])
        y_ref[:, i:i + 1, :] = acc
    for j in range(ow):
        c0, c1 = STRIDE * j, min(STRIDE * j + KERNEL, w)
        acc = y_ref[:, :, c0:c0 + 1]
        for c in range(c0 + 1, c1):
            acc = jnp.maximum(acc, y_ref[:, :, c:c + 1])
        o_ref[:, :, j:j + 1] = acc


def _ref_pool_3d(x3, oh, ow):
    """lax.reduce_window reference on a (nc, h, w) array (fast-path validation
    and the self-test): ceil_mode == right/bottom -inf padding ignored by max."""
    h, w = x3.shape[-2:]
    if jnp.issubdtype(x3.dtype, jnp.floating):
        init = jnp.asarray(-jnp.inf, x3.dtype)
    else:
        init = jnp.asarray(jnp.iinfo(x3.dtype).min, x3.dtype)
    return jax.lax.reduce_window(
        x3, init, jax.lax.max,
        window_dimensions=(1, KERNEL, KERNEL),
        window_strides=(1, STRIDE, STRIDE),
        padding=((0, 0), (0, STRIDE * oh - h), (0, STRIDE * ow - w)))


@functools.lru_cache(maxsize=None)
def _get_pool_fn(nc, h, w, oh, ow, dtype):
    dtype = jnp.dtype(dtype)
    ctile = _choose_ctile(nc, h, w, oh, ow, dtype.itemsize)
    grid = (pl.cdiv(nc, ctile),)

    def build(body):
        return pl.pallas_call(
            functools.partial(body, h=h, w=w, oh=oh, ow=ow),
            out_shape=jax.ShapeDtypeStruct((nc, oh, ow), dtype),
            grid_spec=pltpu.PrefetchScalarGridSpec(
                num_scalar_prefetch=0,
                grid=grid,
                # Full-extent (h, w)/(oh, ow) blocks: every DMA covers one
                # contiguous HBM range; lane-dense whenever W >= 128.
                in_specs=[pl.BlockSpec((ctile, h, w), lambda i: (i, 0, 0))],
                out_specs=pl.BlockSpec((ctile, oh, ow), lambda i: (i, 0, 0)),
                scratch_shapes=[pltpu.VMEM((ctile, oh, w), dtype)],
            ),
            compiler_params=pltpu.CompilerParams(
                dimension_semantics=("parallel",),
                vmem_limit_bytes=_vmem_limit_bytes()),
            cost_estimate=pl.CostEstimate(
                flops=8 * nc * oh * ow,
                transcendentals=0,
                bytes_accessed=nc * (h * w + oh * ow) * dtype.itemsize),
        )

    fast = jax.jit(build(_pool_kernel_strided))
    try:
        # One-off compile + numerical validation of the strided fast path; fall
        # back to the unit-stride kernel if this jax/libtpu combo rejects it.
        probe = (jnp.arange(nc * h * w, dtype=jnp.float32) % 251.0
                 ).astype(dtype).reshape(nc, h, w)
        want = _ref_pool_3d(probe, oh, ow)
        got = jax.block_until_ready(fast(probe))
        if not bool(jnp.allclose(got, want)):
            raise ValueError("strided fast path mismatch")
        return fast
    except Exception:
        return jax.jit(build(_pool_kernel_unrolled))


def maxpool2d_ceil(x):
    """MaxPool2d(kernel_size=3, stride=3, padding=0, ceil_mode=True) on NCHW."""
    n, c, h, w = x.shape
    oh, ow = _pool_out_size(h), _pool_out_size(w)
    fn = _get_pool_fn(n * c, h, w, oh, ow, x.dtype)
    out = fn(x.reshape(n * c, h, w))        # reshapes are metadata-only
    return out.reshape(n, c, oh, ow)


if __name__ == "__main__":
    # Small NCHW feature map implied by the module's usage.
    x = jax.random.normal(jax.random.PRNGKey(0), (2, 4, 16, 16), dtype=jnp.float32)
    y = jax.block_until_ready(maxpool2d_ceil(x))
    oh, ow = _pool_out_size(16), _pool_out_size(16)
    assert y.shape == (2, 4, 6, 6), y.shape
    ref = _ref_pool_3d(x.reshape(8, 16, 16), oh, ow).reshape(2, 4, oh, ow)
    assert jnp.allclose(y, ref), "mismatch vs reference"

    # Ragged, non-square spatial dims + many channels: exercises ceil_mode tap
    # trimming, ctile > 1 and a partial trailing channel block.
    x2 = jax.random.normal(jax.random.PRNGKey(1), (2, 63, 17, 20), dtype=jnp.float32)
    y2 = jax.block_until_ready(maxpool2d_ceil(x2))
    oh2, ow2 = _pool_out_size(17), _pool_out_size(20)
    assert y2.shape == (2, 63, oh2, ow2), y2.shape
    ref2 = _ref_pool_3d(x2.reshape(126, 17, 20), oh2, ow2).reshape(2, 63, oh2, ow2)
    assert jnp.allclose(y2, ref2), "mismatch vs reference (ragged)"

    print("KERNEL_OK")
</pallas_src>

<mosaic_0001>
module attributes {stable_mosaic.version = 11 : i64} {
  func.func @_pool_kernel_strided(%arg0: i32, %arg1: memref<1x16x16xf32, #tpu.memory_space<vmem>>, %arg2: memref<1x6x6xf32, #tpu.memory_space<vmem>>, %arg3: memref<1x6x16xf32, #tpu.memory_space<vmem>>) attributes {dimension_semantics = [#tpu.dimension_semantics<parallel>], iteration_bounds = array<i64: 8>, scalar_prefetch = 0 : i64, scratch_operands = 1 : i64, tpu.core_type = #tpu.core_type<tc>, window_params = [{transform_indices = @transform_0, window_bounds = array<i64: 1, 16, 16>}, {transform_indices = @transform_1, window_bounds = array<i64: 1, 6, 6>}]} {
    %c0 = arith.constant 0 : index
    %c0_0 = arith.constant 0 : index
    %c0_1 = arith.constant 0 : index
    %0 = tpu.strided_load %arg1[%c0, %c0_0, %c0_1] {strides = array<i32: 1, 3, 1>} : memref<1x16x16xf32, #tpu.memory_space<vmem>>, vector<1x6x16xf32>
    %c0_2 = arith.constant 0 : index
    %c0_3 = arith.constant 0 : index
    %c0_4 = arith.constant 0 : index
    %1 = vector.load %arg3[%c0_2, %c0_3, %c0_4] : memref<1x6x16xf32, #tpu.memory_space<vmem>>, vector<1x6x16xf32>
    tpu.vector_store %arg3[%c0_2, %c0_3, %c0_4], %0 {strides = array<i32>} : memref<1x6x16xf32, #tpu.memory_space<vmem>>, vector<1x6x16xf32>,
    %c0_5 = arith.constant 0 : index
    %c1 = arith.constant 1 : index
    %c0_6 = arith.constant 0 : index
    %2 = tpu.strided_load %arg1[%c0_5, %c1, %c0_6] {strides = array<i32: 1, 3, 1>} : memref<1x16x16xf32, #tpu.memory_space<vmem>>, vector<1x5x16xf32>
    %c0_7 = arith.constant 0 : index
    %c0_8 = arith.constant 0 : index
    %c0_9 = arith.constant 0 : index
    %3 = vector.load %arg3[%c0_7, %c0_8, %c0_9] : memref<1x6x16xf32, #tpu.memory_space<vmem>>, vector<1x5x16xf32>
    %4 = arith.maximumf %3, %2 : vector<1x5x16xf32>
    %c0_10 = arith.constant 0 : index
    %c0_11 = arith.constant 0 : index
    %c0_12 = arith.constant 0 : index
    %5 = vector.load %arg3[%c0_10, %c0_11, %c0_12] : memref<1x6x16xf32, #tpu.memory_space<vmem>>, vector<1x5x16xf32>
    tpu.vector_store %arg3[%c0_10, %c0_11, %c0_12], %4 {strides = array<i32>} : memref<1x6x16xf32, #tpu.memory_space<vmem>>, vector<1x5x16xf32>,
    %c0_13 = arith.constant 0 : index
    %c2 = arith.constant 2 : index
    %c0_14 = arith.constant 0 : index
    %6 = tpu.strided_load %arg1[%c0_13, %c2, %c0_14] {strides = array<i32: 1, 3, 1>} : memref<1x16x16xf32, #tpu.memory_space<vmem>>, vector<1x5x16xf32>
    %c0_15 = arith.constant 0 : index
    %c0_16 = arith.constant 0 : index
    %c0_17 = arith.constant 0 : index
    %7 = vector.load %arg3[%c0_15, %c0_16, %c0_17] : memref<1x6x16xf32, #tpu.memory_space<vmem>>, vector<1x5x16xf32>
    %8 = arith.maximumf %7, %6 : vector<1x5x16xf32>
    %c0_18 = arith.constant 0 : index
    %c0_19 = arith.constant 0 : index
    %c0_20 = arith.constant 0 : index
    %9 = vector.load %arg3[%c0_18, %c0_19, %c0_20] : memref<1x6x16xf32, #tpu.memory_space<vmem>>, vector<1x5x16xf32>
    tpu.vector_store %arg3[%c0_18, %c0_19, %c0_20], %8 {strides = array<i32>} : memref<1x6x16xf32, #tpu.memory_space<vmem>>, vector<1x5x16xf32>,
    %c0_21 = arith.constant 0 : index
    %c0_22 = arith.constant 0 : index
    %c0_23 = arith.constant 0 : index
    %10 = tpu.strided_load %arg3[%c0_21, %c0_22, %c0_23] {strides = array<i32: 1, 1, 3>} : memref<1x6x16xf32, #tpu.memory_space<vmem>>, vector<1x6x6xf32>
    %c0_24 = arith.constant 0 : index
    %c0_25 = arith.constant 0 : index
    %c0_26 = arith.constant 0 : index
    %11 = vector.load %arg2[%c0_24, %c0_25, %c0_26] : memref<1x6x6xf32, #tpu.memory_space<vmem>>, vector<1x6x6xf32>
    tpu.vector_store %arg2[%c0_24, %c0_25, %c0_26], %10 {strides = array<i32>} : memref<1x6x6xf32, #tpu.memory_space<vmem>>, vector<1x6x6xf32>,
    %c0_27 = arith.constant 0 : index
    %c0_28 = arith.constant 0 : index
    %c1_29 = arith.constant 1 : index
    %12 = tpu.strided_load %arg3[%c0_27, %c0_28, %c1_29] {strides = array<i32: 1, 1, 3>} : memref<1x6x16xf32, #tpu.memory_space<vmem>>, vector<1x6x5xf32>
    %c0_30 = arith.constant 0 : index
    %c0_31 = arith.constant 0 : index
    %c0_32 = arith.constant 0 : index
    %13 = vector.load %arg2[%c0_30, %c0_31, %c0_32] : memref<1x6x6xf32, #tpu.memory_space<vmem>>, vector<1x6x5xf32>
    %14 = arith.maximumf %13, %12 : vector<1x6x5xf32>
    %c0_33 = arith.constant 0 : index
    %c0_34 = arith.constant 0 : index
    %c0_35 = arith.constant 0 : index
    %15 = vector.load %arg2[%c0_33, %c0_34, %c0_35] : memref<1x6x6xf32, #tpu.memory_space<vmem>>, vector<1x6x5xf32>
    tpu.vector_store %arg2[%c0_33, %c0_34, %c0_35], %14 {strides = array<i32>} : memref<1x6x6xf32, #tpu.memory_space<vmem>>, vector<1x6x5xf32>,
    %c0_36 = arith.constant 0 : index
    %c0_37 = arith.constant 0 : index
    %c2_38 = arith.constant 2 : index
    %16 = tpu.strided_load %arg3[%c0_36, %c0_37, %c2_38] {strides = array<i32: 1, 1, 3>} : memref<1x6x16xf32, #tpu.memory_space<vmem>>, vector<1x6x5xf32>
    %c0_39 = arith.constant 0 : index
    %c0_40 = arith.constant 0 : index
    %c0_41 = arith.constant 0 : index
    %17 = vector.load %arg2[%c0_39, %c0_40, %c0_41] : memref<1x6x6xf32, #tpu.memory_space<vmem>>, vector<1x6x5xf32>
    %18 = arith.maximumf %17, %16 : vector<1x6x5xf32>
    %c0_42 = arith.constant 0 : index
    %c0_43 = arith.constant 0 : index
    %c0_44 = arith.constant 0 : index
    %19 = vector.load %arg2[%c0_42, %c0_43, %c0_44] : memref<1x6x6xf32, #tpu.memory_space<vmem>>, vector<1x6x5xf32>
    tpu.vector_store %arg2[%c0_42, %c0_43, %c0_44], %18 {strides = array<i32>} : memref<1x6x6xf32, #tpu.memory_space<vmem>>, vector<1x6x5xf32>,
    return
  }
  func.func @transform_0(%arg0: i32) -> (i32, i32, i32) {
    %c0_i32 = arith.constant 0 : i32
    %c0_i32_0 = arith.constant 0 : i32
    %c0_i32_1 = arith.constant 0 : i32
    return %arg0, %c0_i32, %c0_i32_0 : i32, i32, i32
  }
  func.func @transform_1(%arg0: i32) -> (i32, i32, i32) {
    %c0_i32 = arith.constant 0 : i32
    %c0_i32_0 = arith.constant 0 : i32
    %c0_i32_1 = arith.constant 0 : i32
    return %arg0, %c0_i32, %c0_i32_0 : i32, i32, i32
  }
}

module attributes {stable_mosaic.version = 11 : i64} {
  func.func @_pool_kernel_unrolled(%arg0: i32, %arg1: memref<1x16x16xf32, #tpu.memory_space<vmem>>, %arg2: memref<1x6x6xf32, #tpu.memory_space<vmem>>, %arg3: memref<1x6x16xf32, #tpu.memory_space<vmem>>) attributes {dimension_semantics = [#tpu.dimension_semantics<parallel>], iteration_bounds = array<i64: 8>, scalar_prefetch = 0 : i64, scratch_operands = 1 : i64, tpu.core_type = #tpu.core_type<tc>, window_params = [{transform_indices = @transform_0, window_bounds = array<i64: 1, 16, 16>}, {transform_indices = @transform_1, window_bounds = array<i64: 1, 6, 6>}]} {
    %c0 = arith.constant 0 : index
    %c0_0 = arith.constant 0 : index
    %c0_1 = arith.constant 0 : index
    %0 = vector.load %arg1[%c0, %c0_0, %c0_1] : memref<1x16x16xf32, #tpu.memory_space<vmem>>, vector<1x1x16xf32>
    %c0_2 = arith.constant 0 : index
    %c1 = arith.constant 1 : index
    %c0_3 = arith.constant 0 : index
    %1 = vector.load %arg1[%c0_2, %c1, %c0_3] : memref<1x16x16xf32, #tpu.memory_space<vmem>>, vector<1x1x16xf32>
    %2 = arith.maximumf %0, %1 : vector<1x1x16xf32>
    %c0_4 = arith.constant 0 : index
    %c2 = arith.constant 2 : index
    %c0_5 = arith.constant 0 : index
    %3 = vector.load %arg1[%c0_4, %c2, %c0_5] : memref<1x16x16xf32, #tpu.memory_space<vmem>>, vector<1x1x16xf32>
    %4 = arith.maximumf %2, %3 : vector<1x1x16xf32>
    %c0_6 = arith.constant 0 : index
    %c0_7 = arith.constant 0 : index
    %c0_8 = arith.constant 0 : index
    %5 = vector.load %arg3[%c0_6, %c0_7, %c0_8] : memref<1x6x16xf32, #tpu.memory_space<vmem>>, vector<1x1x16xf32>
    tpu.vector_store %arg3[%c0_6, %c0_7, %c0_8], %4 {strides = array<i32>} : memref<1x6x16xf32, #tpu.memory_space<vmem>>, vector<1x1x16xf32>,
    %c0_9 = arith.constant 0 : index
    %c3 = arith.constant 3 : index
    %c0_10 = arith.constant 0 : index
    %6 = vector.load %arg1[%c0_9, %c3, %c0_10] : memref<1x16x16xf32, #tpu.memory_space<vmem>>, vector<1x1x16xf32>
    %c0_11 = arith.constant 0 : index
    %c4 = arith.constant 4 : index
    %c0_12 = arith.constant 0 : index
    %7 = vector.load %arg1[%c0_11, %c4, %c0_12] : memref<1x16x16xf32, #tpu.memory_space<vmem>>, vector<1x1x16xf32>
    %8 = arith.maximumf %6, %7 : vector<1x1x16xf32>
    %c0_13 = arith.constant 0 : index
    %c5 = arith.constant 5 : index
    %c0_14 = arith.constant 0 : index
    %9 = vector.load %arg1[%c0_13, %c5, %c0_14] : memref<1x16x16xf32, #tpu.memory_space<vmem>>, vector<1x1x16xf32>
    %10 = arith.maximumf %8, %9 : vector<1x1x16xf32>
    %c0_15 = arith.constant 0 : index
    %c1_16 = arith.constant 1 : index
    %c0_17 = arith.constant 0 : index
    %11 = vector.load %arg3[%c0_15, %c1_16, %c0_17] : memref<1x6x16xf32, #tpu.memory_space<vmem>>, vector<1x1x16xf32>
    tpu.vector_store %arg3[%c0_15, %c1_16, %c0_17], %10 {strides = array<i32>} : memref<1x6x16xf32, #tpu.memory_space<vmem>>, vector<1x1x16xf32>,
    %c0_18 = arith.constant 0 : index
    %c6 = arith.constant 6 : index
    %c0_19 = arith.constant 0 : index
    %12 = vector.load %arg1[%c0_18, %c6, %c0_19] : memref<1x16x16xf32, #tpu.memory_space<vmem>>, vector<1x1x16xf32>
    %c0_20 = arith.constant 0 : index
    %c7 = arith.constant 7 : index
    %c0_21 = arith.constant 0 : index
    %13 = vector.load %arg1[%c0_20, %c7, %c0_21] : memref<1x16x16xf32, #tpu.memory_space<vmem>>, vector<1x1x16xf32>
    %14 = arith.maximumf %12, %13 : vector<1x1x16xf32>
    %c0_22 = arith.constant 0 : index
    %c8 = arith.constant 8 : index
    %c0_23 = arith.constant 0 : index
    %15 = vector.load %arg1[%c0_22, %c8, %c0_23] : memref<1x16x16xf32, #tpu.memory_space<vmem>>, vector<1x1x16xf32>
    %16 = arith.maximumf %14, %15 : vector<1x1x16xf32>
    %c0_24 = arith.constant 0 : index
    %c2_25 = arith.constant 2 : index
    %c0_26 = arith.constant 0 : index
    %17 = vector.load %arg3[%c0_24, %c2_25, %c0_26] : memref<1x6x16xf32, #tpu.memory_space<vmem>>, vector<1x1x16xf32>
    tpu.vector_store %arg3[%c0_24, %c2_25, %c0_26], %16 {strides = array<i32>} : memref<1x6x16xf32, #tpu.memory_space<vmem>>, vector<1x1x16xf32>,
    %c0_27 = arith.constant 0 : index
    %c9 = arith.constant 9 : index
    %c0_28 = arith.constant 0 : index
    %18 = vector.load %arg1[%c0_27, %c9, %c0_28] : memref<1x16x16xf32, #tpu.memory_space<vmem>>, vector<1x1x16xf32>
    %c0_29 = arith.constant 0 : index
    %c10 = arith.constant 10 : index
    %c0_30 = arith.constant 0 : index
    %19 = vector.load %arg1[%c0_29, %c10, %c0_30] : memref<1x16x16xf32, #tpu.memory_space<vmem>>, vector<1x1x16xf32>
    %20 = arith.maximumf %18, %19 : vector<1x1x16xf32>
    %c0_31 = arith.constant 0 : index
    %c11 = arith.constant 11 : index
    %c0_32 = arith.constant 0 : index
    %21 = vector.load %arg1[%c0_31, %c11, %c0_32] : memref<1x16x16xf32, #tpu.memory_space<vmem>>, vector<1x1x16xf32>
    %22 = arith.maximumf %20, %21 : vector<1x1x16xf32>
    %c0_33 = arith.constant 0 : index
    %c3_34 = arith.constant 3 : index
    %c0_35 = arith.constant 0 : index
    %23 = vector.load %arg3[%c0_33, %c3_34, %c0_35] : memref<1x6x16xf32, #tpu.memory_space<vmem>>, vector<1x1x16xf32>
    tpu.vector_store %arg3[%c0_33, %c3_34, %c0_35], %22 {strides = array<i32>} : memref<1x6x16xf32, #tpu.memory_space<vmem>>, vector<1x1x16xf32>,
    %c0_36 = arith.constant 0 : index
    %c12 = arith.constant 12 : index
    %c0_37 = arith.constant 0 : index
    %24 = vector.load %arg1[%c0_36, %c12, %c0_37] : memref<1x16x16xf32, #tpu.memory_space<vmem>>, vector<1x1x16xf32>
    %c0_38 = arith.constant 0 : index
    %c13 = arith.constant 13 : index
    %c0_39 = arith.constant 0 : index
    %25 = vector.load %arg1[%c0_38, %c13, %c0_39] : memref<1x16x16xf32, #tpu.memory_space<vmem>>, vector<1x1x16xf32>
    %26 = arith.maximumf %24, %25 : vector<1x1x16xf32>
    %c0_40 = arith.constant 0 : index
    %c14 = arith.constant 14 : index
    %c0_41 = arith.constant 0 : index
    %27 = vector.load %arg1[%c0_40, %c14, %c0_41] : memref<1x16x16xf32, #tpu.memory_space<vmem>>, vector<1x1x16xf32>
    %28 = arith.maximumf %26, %27 : vector<1x1x16xf32>
    %c0_42 = arith.constant 0 : index
    %c4_43 = arith.constant 4 : index
    %c0_44 = arith.constant 0 : index
    %29 = vector.load %arg3[%c0_42, %c4_43, %c0_44] : memref<1x6x16xf32, #tpu.memory_space<vmem>>, vector<1x1x16xf32>
    tpu.vector_store %arg3[%c0_42, %c4_43, %c0_44], %28 {strides = array<i32>} : memref<1x6x16xf32, #tpu.memory_space<vmem>>, vector<1x1x16xf32>,
    %c0_45 = arith.constant 0 : index
    %c15 = arith.constant 15 : index
    %c0_46 = arith.constant 0 : index
    %30 = vector.load %arg1[%c0_45, %c15, %c0_46] : memref<1x16x16xf32, #tpu.memory_space<vmem>>, vector<1x1x16xf32>
    %c0_47 = arith.constant 0 : index
    %c5_48 = arith.constant 5 : index
    %c0_49 = arith.constant 0 : index
    %31 = vector.load %arg3[%c0_47, %c5_48, %c0_49] : memref<1x6x16xf32, #tpu.memory_space<vmem>>, vector<1x1x16xf32>
    tpu.vector_store %arg3[%c0_47, %c5_48, %c0_49], %30 {strides = array<i32>} : memref<1x6x16xf32, #tpu.memory_space<vmem>>, vector<1x1x16xf32>,
    %c0_50 = arith.constant 0 : index
    %c0_51 = arith.constant 0 : index
    %c0_52 = arith.constant 0 : index
    %32 = vector.load %arg3[%c0_50, %c0_51, %c0_52] : memref<1x6x16xf32, #tpu.memory_space<vmem>>, vector<1x6x1xf32>
    %c0_53 = arith.constant 0 : index
    %c0_54 = arith.constant 0 : index
    %c1_55 = arith.constant 1 : index
    %33 = vector.load %arg3[%c0_53, %c0_54, %c1_55] : memref<1x6x16xf32, #tpu.memory_space<vmem>>, vector<1x6x1xf32>
    %34 = arith.maximumf %32, %33 : vector<1x6x1xf32>
    %c0_56 = arith.constant 0 : index
    %c0_57 = arith.constant 0 : index
    %c2_58 = arith.constant 2 : index
    %35 = vector.load %arg3[%c0_56, %c0_57, %c2_58] : memref<1x6x16xf32, #tpu.memory_space<vmem>>, vector<1x6x1xf32>
    %36 = arith.maximumf %34, %35 : vector<1x6x1xf32>
    %c0_59 = arith.constant 0 : index
    %c0_60 = arith.constant 0 : index
    %c0_61 = arith.constant 0 : index
    %37 = vector.load %arg2[%c0_59, %c0_60, %c0_61] : memref<1x6x6xf32, #tpu.memory_space<vmem>>, vector<1x6x1xf32>
    tpu.vector_store %arg2[%c0_59, %c0_60, %c0_61], %36 {strides = array<i32>} : memref<1x6x6xf32, #tpu.memory_space<vmem>>, vector<1x6x1xf32>,
    %c0_62 = arith.constant 0 : index
    %c0_63 = arith.constant 0 : index
    %c3_64 = arith.constant 3 : index
    %38 = vector.load %arg3[%c0_62, %c0_63, %c3_64] : memref<1x6x16xf32, #tpu.memory_space<vmem>>, vector<1x6x1xf32>
    %c0_65 = arith.constant 0 : index
    %c0_66 = arith.constant 0 : index
    %c4_67 = arith.constant 4 : index
    %39 = vector.load %arg3[%c0_65, %c0_66, %c4_67] : memref<1x6x16xf32, #tpu.memory_space<vmem>>, vector<1x6x1xf32>
    %40 = arith.maximumf %38, %39 : vector<1x6x1xf32>
    %c0_68 = arith.constant 0 : index
    %c0_69 = arith.constant 0 : index
    %c5_70 = arith.constant 5 : index
    %41 = vector.load %arg3[%c0_68, %c0_69, %c5_70] : memref<1x6x16xf32, #tpu.memory_space<vmem>>, vector<1x6x1xf32>
    %42 = arith.maximumf %40, %41 : vector<1x6x1xf32>
    %c0_71 = arith.constant 0 : index
    %c0_72 = arith.constant 0 : index
    %c1_73 = arith.constant 1 : index
    %43 = vector.load %arg2[%c0_71, %c0_72, %c1_73] : memref<1x6x6xf32, #tpu.memory_space<vmem>>, vector<1x6x1xf32>
    tpu.vector_store %arg2[%c0_71, %c0_72, %c1_73], %42 {strides = array<i32>} : memref<1x6x6xf32, #tpu.memory_space<vmem>>, vector<1x6x1xf32>,
    %c0_74 = arith.constant 0 : index
    %c0_75 = arith.constant 0 : index
    %c6_76 = arith.constant 6 : index
    %44 = vector.load %arg3[%c0_74, %c0_75, %c6_76] : memref<1x6x16xf32, #tpu.memory_space<vmem>>, vector<1x6x1xf32>
    %c0_77 = arith.constant 0 : index
    %c0_78 = arith.constant 0 : index
    %c7_79 = arith.constant 7 : index
    %45 = vector.load %arg3[%c0_77, %c0_78, %c7_79] : memref<1x6x16xf32, #tpu.memory_space<vmem>>, vector<1x6x1xf32>
    %46 = arith.maximumf %44, %45 : vector<1x6x1xf32>
    %c0_80 = arith.constant 0 : index
    %c0_81 = arith.constant 0 : index
    %c8_82 = arith.constant 8 : index
    %47 = vector.load %arg3[%c0_80, %c0_81, %c8_82] : memref<1x6x16xf32, #tpu.memory_space<vmem>>, vector<1x6x1xf32>
    %48 = arith.maximumf %46, %47 : vector<1x6x1xf32>
    %c0_83 = arith.constant 0 : index
    %c0_84 = arith.constant 0 : index
    %c2_85 = arith.constant 2 : index
    %49 = vector.load %arg2[%c0_83, %c0_84, %c2_85] : memref<1x6x6xf32, #tpu.memory_space<vmem>>, vector<1x6x1xf32>
    tpu.vector_store %arg2[%c0_83, %c0_84, %c2_85], %48 {strides = array<i32>} : memref<1x6x6xf32, #tpu.memory_space<vmem>>, vector<1x6x1xf32>,
    %c0_86 = arith.constant 0 : index
    %c0_87 = arith.constant 0 : index
    %c9_88 = arith.constant 9 : index
    %50 = vector.load %arg3[%c0_86, %c0_87, %c9_88] : memref<1x6x16xf32, #tpu.memory_space<vmem>>, vector<1x6x1xf32>
    %c0_89 = arith.constant 0 : index
    %c0_90 = arith.constant 0 : index
    %c10_91 = arith.constant 10 : index
    %51 = vector.load %arg3[%c0_89, %c0_90, %c10_91] : memref<1x6x16xf32, #tpu.memory_space<vmem>>, vector<1x6x1xf32>
    %52 = arith.maximumf %50, %51 : vector<1x6x1xf32>
    %c0_92 = arith.constant 0 : index
    %c0_93 = arith.constant 0 : index
    %c11_94 = arith.constant 11 : index
    %53 = vector.load %arg3[%c0_92, %c0_93, %c11_94] : memref<1x6x16xf32, #tpu.memory_space<vmem>>, vector<1x6x1xf32>
    %54 = arith.maximumf %52, %53 : vector<1x6x1xf32>
    %c0_95 = arith.constant 0 : index
    %c0_96 = arith.constant 0 : index
    %c3_97 = arith.constant 3 : index
    %55 = vector.load %arg2[%c0_95, %c0_96, %c3_97] : memref<1x6x6xf32, #tpu.memory_space<vmem>>, vector<1x6x1xf32>
    tpu.vector_store %arg2[%c0_95, %c0_96, %c3_97], %54 {strides = array<i32>} : memref<1x6x6xf32, #tpu.memory_space<vmem>>, vector<1x6x1xf32>,
    %c0_98 = arith.constant 0 : index
    %c0_99 = arith.constant 0 : index
    %c12_100 = arith.constant 12 : index
    %56 = vector.load %arg3[%c0_98, %c0_99, %c12_100] : memref<1x6x16xf32, #tpu.memory_space<vmem>>, vector<1x6x1xf32>
    %c0_101 = arith.constant 0 : index
    %c0_102 = arith.constant 0 : index
    %c13_103 = arith.constant 13 : index
    %57 = vector.load %arg3[%c0_101, %c0_102, %c13_103] : memref<1x6x16xf32, #tpu.memory_space<vmem>>, vector<1x6x1xf32>
    %58 = arith.maximumf %56, %57 : vector<1x6x1xf32>
    %c0_104 = arith.constant 0 : index
    %c0_105 = arith.constant 0 : index
    %c14_106 = arith.constant 14 : index
    %59 = vector.load %arg3[%c0_104, %c0_105, %c14_106] : memref<1x6x16xf32, #tpu.memory_space<vmem>>, vector<1x6x1xf32>
    %60 = arith.maximumf %58, %59 : vector<1x6x1xf32>
    %c0_107 = arith.constant 0 : index
    %c0_108 = arith.constant 0 : index
    %c4_109 = arith.constant 4 : index
    %61 = vector.load %arg2[%c0_107, %c0_108, %c4_109] : memref<1x6x6xf32, #tpu.memory_space<vmem>>, vector<1x6x1xf32>
    tpu.vector_store %arg2[%c0_107, %c0_108, %c4_109], %60 {strides = array<i32>} : memref<1x6x6xf32, #tpu.memory_space<vmem>>, vector<1x6x1xf32>,
    %c0_110 = arith.constant 0 : index
    %c0_111 = arith.constant 0 : index
    %c15_112 = arith.constant 15 : index
    %62 = vector.load %arg3[%c0_110, %c0_111, %c15_112] : memref<1x6x16xf32, #tpu.memory_space<vmem>>, vector<1x6x1xf32>
    %c0_113 = arith.constant 0 : index
    %c0_114 = arith.constant 0 : index
    %c5_115 = arith.constant 5 : index
    %63 = vector.load %arg2[%c0_113, %c0_114, %c5_115] : memref<1x6x6xf32, #tpu.memory_space<vmem>>, vector<1x6x1xf32>
    tpu.vector_store %arg2[%c0_113, %c0_114, %c5_115], %62 {strides = array<i32>} : memref<1x6x6xf32, #tpu.memory_space<vmem>>, vector<1x6x1xf32>,
    return
  }
  func.func @transform_0(%arg0: i32) -> (i32, i32, i32) {
    %c0_i32 = arith.constant 0 : i32
    %c0_i32_0 = arith.constant 0 : i32
    %c0_i32_1 = arith.constant 0 : i32
    return %arg0, %c0_i32, %c0_i32_0 : i32, i32, i32
  }
  func.func @transform_1(%arg0: i32) -> (i32, i32, i32) {
    %c0_i32 = arith.constant 0 : i32
    %c0_i32_0 = arith.constant 0 : i32
    %c0_i32_1 = arith.constant 0 : i32
    return %arg0, %c0_i32, %c0_i32_0 : i32, i32, i32
  }
}

</mosaic_0001>

<llo_original>
// kernel: tpu_custom_call.1
$region0: #{tpu_custom_call.1}
  #allocation0 [shape = 'u32[]', space=smem, size = 0x4, offset = 0x4, fixed_abs, tag = 'smem constant byte address 0x4 - core index']
  #allocation1 [shape = 'u32[144,128]{1,0:T(1,128)}', space=vmem, size = 0x12000, scoped, tag = 'internal scratch']
  #allocation2 [shape = 'f32[1,6,16]{2,1,0:T(8,128)}', space=vmem, size = 0x1000, scoped, tag = 'scratch operand']
  %s0 = inlined_call_operand.hbm [shape: f32[8,16,16], index: 0, kind: input, shape index: {}]
  %s1 = inlined_call_operand.vmem [shape: f32[8,6,6], index: 1, kind: output, shape index: {}]
  %s2 = sld [smem:[#allocation0]]
  $region41: #{tpu_custom_call.1} parent=0
    _
  %s4 = ssub.s32 1, %s2
  %s5 = scalar_select 0, %s4, %s2
  $region1: #{tpu_custom_call.1} parent=0
    #allocation3 [shape = 'u8[16384]{0}', space=vmem, size = 0x4000, scoped, tag = 'input window, operand 0']
    #allocation4 [shape = 's32[2]{0}', space=sflag, size = 0x8, scoped, tag = 'scoped memory for tpu_custom_call.1']
    %6 = vsyncpa [#allocation4], 0
    %s7 = scalar_lea.sflag [#allocation4], 1
    %8 = vsyncpa %s7, 0
    loop: start=0, step=1, limit=10
    $region2: #{tpu_custom_call.1} parent=1 // loop_pre_header
      _
    $region3: #{tpu_custom_call.1} parent=1 // loop_header
      %s10 = sphi 0, %s14
      %p11 = scmp.ge.s32.totalorder %s10, 10
      %s20 = sphi 0, %s22
      %s23 = sphi 0, %s20
      %s24 = sphi 0, %s23
      %s40 = sphi 0, %s24
      %s46 = sphi 0, %s48
      %s49 = sphi 0, %s46
      %s50 = sphi 0, %s49
      %s66 = sphi 0, %s50
    $region4: #{tpu_custom_call.1} parent=1 // loop_header_branch
      %13 = sbr.rel (%p11) target = $region8
    $region5: #{tpu_custom_call.1} parent=1 // loop_body
      %s15 = ssub.s32 %s10, 1
      %s16 = ssub.s32 %s10, 2
      %s17 = sadd.s32 %s10, 1
      %s18 = ssub.s32 %s10, %s17
      %p19 = scmp.eq.s32.totalorder %s18, 0
      %s21 = sadd.s32 %s20, 1
      %s22 = scalar_select %p19, %s20, %s21
      %p25 = pneg %p19
      %p26 = scmp.eq.s32.totalorder %s10, 7
      %p27 = por %p25, %p26
      %p28 = scmp.ne.s32.totalorder %s20, %s23
      %p29 = scmp.eq.s32.totalorder %s10, 0
      %p30 = por %p28, %p29
      %p31 = scmp.ne.s32.totalorder %s20, %s23
      %p32 = scmp.eq.s32.totalorder %s15, 7
      %p33 = por %p31, %p32
      %p34 = scmp.ne.s32.totalorder %s23, %s24
      %p35 = scmp.eq.s32.totalorder %s15, 0
      %p36 = por %p34, %p35
      %p37 = scmp.ne.s32.totalorder %s23, %s24
      %p38 = scmp.eq.s32.totalorder %s16, 7
      %p39 = por %p37, %p38
      %p41 = scmp.ne.s32.totalorder %s24, %s40
      %p42 = scmp.eq.s32.totalorder %s16, 0
      %p43 = por %p41, %p42
      %s44 = ssub.s32 %s10, %s17
      %p45 = scmp.eq.s32.totalorder %s44, 0
      %s47 = sadd.s32 %s46, 1
      %s48 = scalar_select %p45, %s46, %s47
      %p51 = pneg %p45
      %p52 = scmp.eq.s32.totalorder %s10, 7
      %p53 = por %p51, %p52
      %p54 = scmp.ne.s32.totalorder %s46, %s49
      %p55 = scmp.eq.s32.totalorder %s10, 0
      %p56 = por %p54, %p55
      %p57 = scmp.ne.s32.totalorder %s46, %s49
      %p58 = scmp.eq.s32.totalorder %s15, 7
      %p59 = por %p57, %p58
      %p60 = scmp.ne.s32.totalorder %s49, %s50
      %p61 = scmp.eq.s32.totalorder %s15, 0
      %p62 = por %p60, %p61
      %p63 = scmp.ne.s32.totalorder %s49, %s50
      %p64 = scmp.eq.s32.totalorder %s16, 7
      %p65 = por %p63, %p64
      %p67 = scmp.ne.s32.totalorder %s50, %s66
      %p68 = scmp.eq.s32.totalorder %s16, 0
      %p69 = por %p67, %p68
      %p70 = scmp.le.s32.totalorder 1, %s10
      %p71 = scmp.lt.s32.totalorder %s10, 9
      %p72 = pnand %p70, %p71
      %p73 = pneg %p72
      // Predicated region
      $region9: #{tpu_custom_call.1} parent=5 // pred_check
        _
      $region10: #{tpu_custom_call.1} parent=5 // pred_check_branch
        %75 = sbr.rel (%p72) target = $region12
      $region11: #{tpu_custom_call.1} parent=5 // pred_region
        %s76 = ssub.s32 %s10, 1
      $region12: #{tpu_custom_call.1} parent=5 // pred_fallthru
        _
      %p77 = scmp.lt.s32.totalorder %s10, 8
      // Predicated region
      $region13: #{tpu_custom_call.1} parent=5 // pred_check
        %p78 = pneg %p77
      $region14: #{tpu_custom_call.1} parent=5 // pred_check_branch
        %80 = sbr.rel (%p78) target = $region16
      $region15: #{tpu_custom_call.1} parent=5 // pred_region
        // Predicated region
        $region17: #{tpu_custom_call.1} parent=15 // pred_check
          %p81 = pneg %p30
        $region18: #{tpu_custom_call.1} parent=15 // pred_check_branch
          %83 = sbr.rel (%p81) target = $region20
        $region19: #{tpu_custom_call.1} parent=15 // pred_region
          %s84 = sand.u32 %s20, 1
          %s85 = scalar_lea.sflag [#allocation4], %s84
          %s86 = sand.u32 %s20, 1
          %s87 = smul.addr %s86, 16
          %s88 = scalar_lea.vmem [#allocation3], %s87
          %s90 = ssub.s32 256, 256
          %91 = vsyncadd %s85, %s90
          %s92 = smul.addr %s10, 2
          %s93 = smul.addr %s92, 128
          %s94 = scalar_lea.hbm %s0, %s93
          %s95 = sshll.u32 %s88, 4
          %s96 = int_to_ptr.vmem [resolvable:$true] %s95
          %101 = dma.hbm_to_vmem [thread:$0]  %s94, 256, %s96, %s85, 128, 128, 8
        $region20: #{tpu_custom_call.1} parent=15 // pred_fallthru
          _
      $region16: #{tpu_custom_call.1} parent=5 // pred_fallthru
        _
      %p102 = scmp.le.s32.totalorder 1, %s10
      %p103 = scmp.lt.s32.totalorder %s10, 9
      %p104 = pnand %p102, %p103
      %p105 = pneg %p104
      // Predicated region
      $region21: #{tpu_custom_call.1} parent=5 // pred_check
        _
      $region22: #{tpu_custom_call.1} parent=5 // pred_check_branch
        %107 = sbr.rel (%p104) target = $region24
      $region23: #{tpu_custom_call.1} parent=5 // pred_region
        %s108 = ssub.s32 %s10, 1
        %s109 = sand.u32 %s23, 1
        %s110 = scalar_lea.sflag [#allocation4], %s109
        %s111 = sand.u32 %s23, 1
        %s112 = smul.addr %s111, 16
        %s113 = scalar_lea.vmem [#allocation3], %s112
        // Predicated region
        $region25: #{tpu_custom_call.1} parent=23 // pred_check
          %p114 = pneg %p36
        $region26: #{tpu_custom_call.1} parent=23 // pred_check_branch
          %116 = sbr.rel (%p114) target = $region28
        $region27: #{tpu_custom_call.1} parent=23 // pred_region
          %117 = dma.done %s110, 256
        $region28: #{tpu_custom_call.1} parent=23 // pred_fallthru
          _
        %s118 = sand.u32 %s23, 1
        %s119 = scalar_lea.sflag [#allocation4], %s118
        %s120 = sand.u32 %s23, 1
        %s121 = smul.addr %s120, 16
        %s122 = scalar_lea.vmem [#allocation3], %s121
        %p123 = pneg %p36
        %p124 = pneg %p33
        %p125 = pneg %p62
        %p126 = pneg %p59
        %p127 = scmp.lt.s32.totalorder %s15, 7
        %s128 = scalar_select %p127, %s15, 7
        %s129 = smul.addr %s128, 8
        %s130 = scalar_lea.vmem %s1, %s129
        %p131 = scmp.lt.s32.totalorder %s15, 7
        %s132 = scalar_select %p131, %s15, 7
        %s133 = smul.addr %s132, 8
        %s134 = scalar_lea.vmem %s1, %s133
        %v135 = vld [vmem:[%s113] sm:$0x1]
        %v136 = vld [vmem:[%s113 + $0x1] sm:$0x1]
        %v137 = vmax.f32 %v135, %v136
        %v138 = vld [vmem:[%s113 + $0x2] sm:$0x1]
        %v139 = vmax.f32 %v137, %v138
        %vm140 = vcmask 122880
        %141 = vst.msk [vmem:[#allocation2] sm:$0x1] %vm140, %v139
        %v142 = vld [vmem:[%s113 + $0x3] sm:$0x1]
        %v143 = vld [vmem:[%s113 + $0x4] sm:$0x1]
        %v144 = vmax.f32 %v142, %v143
        %v145 = vld [vmem:[%s113 + $0x5] sm:$0x1]
        %v146 = vmax.f32 %v144, %v145
        %147 = vst.msk [vmem:[#allocation2 + $0x1] sm:$0x1] %vm140, %v146
        %v148 = vld [vmem:[%s113 + $0x6] sm:$0x1]
        %v149 = vld [vmem:[%s113 + $0x7] sm:$0x1]
        %v150 = vmax.f32 %v148, %v149
        %v151 = vld [vmem:[%s113 + $0x8] sm:$0x1]
        %v152 = vmax.f32 %v150, %v151
        %153 = vst.msk [vmem:[#allocation2 + $0x2] sm:$0x1] %vm140, %v152
        %v154 = vld [vmem:[%s113 + $0x9] sm:$0x1]
        %v155 = vld [vmem:[%s113 + $0xa] sm:$0x1]
        %v156 = vmax.f32 %v154, %v155
        %v157 = vld [vmem:[%s113 + $0xb] sm:$0x1]
        %v158 = vmax.f32 %v156, %v157
        %159 = vst.msk [vmem:[#allocation2 + $0x3] sm:$0x1] %vm140, %v158
        %v160 = vld [vmem:[%s113 + $0xc] sm:$0x1]
        %v161 = vld [vmem:[%s113 + $0xd] sm:$0x1]
        %v162 = vmax.f32 %v160, %v161
        %v163 = vld [vmem:[%s113 + $0xe] sm:$0x1]
        %v164 = vmax.f32 %v162, %v163
        %165 = vst.msk [vmem:[#allocation2 + $0x4] sm:$0x1] %vm140, %v164
        %v166 = vld [vmem:[%s113 + $0xf] sm:$0x1]
        %167 = vst.msk [vmem:[#allocation2 + $0x5] sm:$0x1] %vm140, %v166
        %v168 = vld [vmem:[#allocation2] sm:$0x3f]
        %170 = vrot.lane.b32.xlu0 %v168, 127
        %v171 = vpop.permute.xlu0 %170
        %v173 = vmax.f32 %v168, %v171
        %174 = vrot.lane.b32.xlu0 %v168, 126
        %v175 = vpop.permute.xlu0 %174
        %v177 = vmax.f32 %v173, %v175
        %vm178 = vcmask 5120
        %179 = vst.msk [vmem:[%s134] sm:$0x3f] %vm178, %v177
        %v180 = vld [vmem:[#allocation2] sm:$0x3f]
        %182 = vrot.lane.b32.xlu0 %v180, 127
        %v183 = vpop.permute.xlu0 %182
        %v185 = vmax.f32 %v180, %v183
        %186 = vrot.lane.b32.xlu0 %v180, 126
        %v187 = vpop.permute.xlu0 %186
        %v189 = vmax.f32 %v185, %v187
        %191 = vrot.lane.b32.xlu0 %v189, 126
        %v192 = vpop.permute.xlu0 %191
        %vm194 = vcmask 13320
        %195 = vst.msk [vmem:[%s134] sm:$0x3f] %vm194, %v192
        %v196 = vld [vmem:[#allocation2] sm:$0x3f]
        %198 = vrot.lane.b32.xlu0 %v196, 127
        %v199 = vpop.permute.xlu0 %198
        %v201 = vmax.f32 %v196, %v199
        %202 = vrot.lane.b32.xlu0 %v196, 126
        %v203 = vpop.permute.xlu0 %202
        %v205 = vmax.f32 %v201, %v203
        %207 = vrot.lane.b32.xlu0 %v205, 124
        %v208 = vpop.permute.xlu0 %207
        %vm210 = vcmask 21520
        %211 = vst.msk [vmem:[%s134] sm:$0x3f] %vm210, %v208
        %v212 = vld [vmem:[#allocation2] sm:$0x3f]
        %214 = vrot.lane.b32.xlu0 %v212, 127
        %v215 = vpop.permute.xlu0 %214
        %v217 = vmax.f32 %v212, %v215
        %218 = vrot.lane.b32.xlu0 %v212, 126
        %v219 = vpop.permute.xlu0 %218
        %v221 = vmax.f32 %v217, %v219
        %223 = vrot.lane.b32.xlu0 %v221, 122
        %v224 = vpop.permute.xlu0 %223
        %vm226 = vcmask 29720
        %227 = vst.msk [vmem:[%s134] sm:$0x3f] %vm226, %v224
        %v228 = vld [vmem:[#allocation2] sm:$0x3f]
        %230 = vrot.lane.b32.xlu0 %v228, 127
        %v231 = vpop.permute.xlu0 %230
        %v233 = vmax.f32 %v228, %v231
        %234 = vrot.lane.b32.xlu0 %v228, 126
        %v235 = vpop.permute.xlu0 %234
        %v237 = vmax.f32 %v233, %v235
        %239 = vrot.lane.b32.xlu0 %v237, 120
        %v240 = vpop.permute.xlu0 %239
        %vm242 = vcmask 37920
        %243 = vst.msk [vmem:[%s134] sm:$0x3f] %vm242, %v240
        %v244 = vld [vmem:[#allocation2] sm:$0x3f]
        %246 = vrot.lane.b32.xlu0 %v244, 118
        %v247 = vpop.permute.xlu0 %246
        %vm249 = vcmask 46120
        %250 = vst.msk [vmem:[%s134] sm:$0x3f] %vm249, %v247
        %p251 = scmp.lt.s32.totalorder %s15, 7
        %s252 = scalar_select %p251, %s15, 7
        %s253 = smul.addr %s252, 8
        %s254 = scalar_lea.vmem %s1, %s253
        // Predicated region
        $region29: #{tpu_custom_call.1} parent=23 // pred_check
          %p255 = pneg %p59
        $region30: #{tpu_custom_call.1} parent=23 // pred_check_branch
          %257 = sbr.rel (%p255) target = $region32
        $region31: #{tpu_custom_call.1} parent=23 // pred_region
          _
        $region32: #{tpu_custom_call.1} parent=23 // pred_fallthru
          _
      $region24: #{tpu_custom_call.1} parent=5 // pred_fallthru
        _
      %p258 = scmp.le.s32.totalorder 2, %s10
      // Predicated region
      $region33: #{tpu_custom_call.1} parent=5 // pred_check
        %p259 = pneg %p258
      $region34: #{tpu_custom_call.1} parent=5 // pred_check_branch
        %261 = sbr.rel (%p259) target = $region36
      $region35: #{tpu_custom_call.1} parent=5 // pred_region
        %s262 = ssub.s32 %s10, 2
        // Predicated region
        $region37: #{tpu_custom_call.1} parent=35 // pred_check
          %p263 = pneg %p65
        $region38: #{tpu_custom_call.1} parent=35 // pred_check_branch
          %265 = sbr.rel (%p263) target = $region40
        $region39: #{tpu_custom_call.1} parent=35 // pred_region
          %p266 = scmp.lt.s32.totalorder %s16, 7
          %s267 = scalar_select %p266, %s16, 7
          %s268 = smul.addr %s267, 8
          %s269 = scalar_lea.vmem %s1, %s268
        $region40: #{tpu_custom_call.1} parent=35 // pred_fallthru
          _
      $region36: #{tpu_custom_call.1} parent=5 // pred_fallthru
        _
    $region6: #{tpu_custom_call.1} parent=1 // loop_footer
      %s14 = sadd.s32 1, %s10
    $region7: #{tpu_custom_call.1} parent=1 // loop_footer_branch
      %9 = sbr.rel target = $region3
    $region8: #{tpu_custom_call.1} parent=1 // loop_exit
      _
    %270 = vsyncpa [#allocation4], 1
    %s271 = scalar_lea.sflag [#allocation4], 1
    %272 = vsyncpa %s271, 1

</llo_original>
